<compile_context>
chip_gen: v5e
topology: v5e:2x2
jax: 0.10.0
libtpu: 0.0.40
codegen_flags: <defaults>
</compile_context>

<pallas_src>
import math

import jax
import jax.numpy as jnp
from jax.experimental import pallas as pl
from jax.experimental.pallas import tpu as pltpu


def _identity_copy_kernel(x_ref, o_ref):
    # Whole-tile load and store; exact dtype / value pass-through.
    o_ref[...] = x_ref[...]


# Lane-dense widths to try (largest first).  All are multiples of 128.
_LANE_WIDTHS = (1024, 512, 256, 128)

# ~2 MiB per tile -> with double-buffered input + output (4 buffers) this is
# ~8 MiB of VMEM, comfortably below the 16 MiB (v5e) / 32 MiB (v6e, v7x)
# scoped-VMEM defaults while being large enough (>512-wide, multi-MiB) to sit
# near the HBM roofline.
_TARGET_TILE_BYTES = 2 * 1024 * 1024


def _lane_dense_copy(flat: jax.Array) -> jax.Array:
    """Copy a 1-D array through a lane-dense tiled Pallas kernel."""
    total = flat.shape[0]
    itemsize = jnp.dtype(flat.dtype).itemsize

    # Pick the widest lane width that divides the element count; otherwise
    # pad up to a multiple of 128 (only happens for tiny/odd sizes).
    width = None
    for w in _LANE_WIDTHS:
        if total % w == 0:
            width = w
            break
    if width is None:
        width = 128
        padded_total = ((total + width - 1) // width) * width
        flat = jnp.pad(flat, (0, padded_total - total))
    padded_total = flat.shape[0]

    rows = padded_total // width
    x2d = flat.reshape(rows, width)

    # Tile the row axis. Blocks must have the second-to-last dim divisible by
    # 8 (or equal to the full dim) and the last dim divisible by 128 (width
    # already is).
    tile_rows_target = max(8, _TARGET_TILE_BYTES // (width * itemsize))
    if tile_rows_target >= rows:
        tile_rows = rows  # single block along rows; full-dim block is legal
    else:
        tile_rows = max(8, (tile_rows_target // 8) * 8)

    num_blocks = pl.cdiv(rows, tile_rows)

    out2d = pl.pallas_call(
        _identity_copy_kernel,
        out_shape=jax.ShapeDtypeStruct((rows, width), flat.dtype),
        grid=(num_blocks,),
        in_specs=[pl.BlockSpec((tile_rows, width), lambda i: (i, 0))],
        out_specs=pl.BlockSpec((tile_rows, width), lambda i: (i, 0)),
        compiler_params=pltpu.CompilerParams(
            dimension_semantics=("parallel",),
        ),
        cost_estimate=pl.CostEstimate(
            flops=0,
            transcendentals=0,
            bytes_accessed=2 * padded_total * itemsize,
        ),
    )(x2d)

    out_flat = out2d.reshape(-1)
    if padded_total != total:
        out_flat = out_flat[:total]
    return out_flat


def wireframe_gnn_identity_forward(x: jax.Array) -> jax.Array:
    """Equivalent of WireframeGNNIdentityBatchFriendly()(data) == data.x.

    x: (N, F) node-feature matrix (any dtype). Returns an array with
    identical shape, dtype and values.
    """
    orig_shape = x.shape
    total = math.prod(orig_shape) if orig_shape else 1
    if total == 0:
        return x  # nothing to copy

    flat = x.reshape(total)          # free layout plumbing (row-major view)
    out_flat = _lane_dense_copy(flat)
    return out_flat.reshape(orig_shape)


if __name__ == "__main__":
    key = jax.random.PRNGKey(0)

    # Small, module-consistent shapes: a wireframe graph with 8 nodes and
    # 32-dim node features ("data.x" in torch_geometric convention).
    num_nodes, feat_dim = 8, 32
    k_x, k_e, k_y = jax.random.split(key, 3)
    x = jax.random.normal(k_x, (num_nodes, feat_dim), dtype=jnp.float32)
    # edge_index / batch exist on `data` but are unused by the forward pass.
    edge_index = jax.random.randint(k_e, (2, 16), 0, num_nodes, dtype=jnp.int32)

    out = wireframe_gnn_identity_forward(x)
    out = jax.block_until_ready(out)
    assert out.shape == x.shape and out.dtype == x.dtype
    assert bool(jnp.array_equal(out, x))

    # Extra check: an awkward shape that exercises the pad-to-128 path.
    y = jax.random.normal(k_y, (7, 13), dtype=jnp.float32)
    out_y = jax.block_until_ready(wireframe_gnn_identity_forward(y))
    assert out_y.shape == y.shape and out_y.dtype == y.dtype
    assert bool(jnp.array_equal(out_y, y))

    print("KERNEL_OK")
</pallas_src>

<mosaic_0001>
module attributes {stable_mosaic.version = 11 : i64} {
  func.func @_identity_copy_kernel(%arg0: i32, %arg1: memref<1x256xf32, #tpu.memory_space<vmem>>, %arg2: memref<1x256xf32, #tpu.memory_space<vmem>>) attributes {dimension_semantics = [#tpu.dimension_semantics<parallel>], iteration_bounds = array<i64: 1>, scalar_prefetch = 0 : i64, scratch_operands = 0 : i64, tpu.core_type = #tpu.core_type<tc>, window_params = [{transform_indices = @transform_0, window_bounds = array<i64: 1, 256>}, {transform_indices = @transform_1, window_bounds = array<i64: 1, 256>}]} {
    %c0 = arith.constant 0 : index
    %c0_0 = arith.constant 0 : index
    %0 = vector.load %arg1[%c0, %c0_0] : memref<1x256xf32, #tpu.memory_space<vmem>>, vector<1x256xf32>
    %c0_1 = arith.constant 0 : index
    %c0_2 = arith.constant 0 : index
    %1 = vector.load %arg2[%c0_1, %c0_2] : memref<1x256xf32, #tpu.memory_space<vmem>>, vector<1x256xf32>
    tpu.vector_store %arg2[%c0_1, %c0_2], %0 {strides = array<i32>} : memref<1x256xf32, #tpu.memory_space<vmem>>, vector<1x256xf32>,
    return
  }
  func.func @transform_0(%arg0: i32) -> (i32, i32) {
    %c0_i32 = arith.constant 0 : i32
    %c0_i32_0 = arith.constant 0 : i32
    return %arg0, %c0_i32 : i32, i32
  }
  func.func @transform_1(%arg0: i32) -> (i32, i32) {
    %c0_i32 = arith.constant 0 : i32
    %c0_i32_0 = arith.constant 0 : i32
    return %arg0, %c0_i32 : i32, i32
  }
}

</mosaic_0001>

<llo_original>
// kernel: tpu_custom_call.1
$region0: #{tpu_custom_call.1}
  #allocation0 [shape = 'u32[]', space=smem, size = 0x4, offset = 0x4, fixed_abs, tag = 'smem constant byte address 0x4 - core index']
  #allocation1 [shape = 'u32[72,128]{1,0:T(1,128)}', space=vmem, size = 0x9000, scoped, tag = 'internal scratch']
  %s0 = inlined_call_operand.hbm [shape: f32[1,256], index: 0, kind: input, shape index: {}]
  %s1 = inlined_call_operand.hbm [shape: f32[1,256], index: 1, kind: output, shape index: {}]
  %s2 = sld [smem:[#allocation0]]
  $region18: #{tpu_custom_call.1} parent=0
    _
  %s4 = ssub.s32 1, %s2
  %s5 = scalar_select 0, %s4, %s2
  $region1: #{tpu_custom_call.1} parent=0
    #allocation2 [shape = 'u8[1024]{0}', space=vmem, size = 0x400, scoped, tag = 'input window, operand 0, single buffered']
    #allocation3 [shape = 's32[1]{0}', space=sflag, size = 0x4, scoped, tag = 'scoped memory for tpu_custom_call.1']
    #allocation4 [shape = 's32[1]{0}', space=sflag, size = 0x4, scoped, tag = 'scoped memory for tpu_custom_call.1']
    #allocation5 [shape = 'u8[1024]{0}', space=vmem, size = 0x400, scoped, tag = 'output window, operand 0, single buffered']
    %6 = vsyncpa [#allocation3], 0
    %7 = vsyncpa [#allocation4], 0
    // Predicated region
    $region2: #{tpu_custom_call.1} parent=1 // pred_check
      _
    $region3: #{tpu_custom_call.1} parent=1 // pred_check_branch
      %9 = sbr.rel (0) target = $region5
    $region4: #{tpu_custom_call.1} parent=1 // pred_region
      %11 = vsyncadd [#allocation3], 0
      %s13 = sshll.u32 %s0, 4
      %s14 = int_to_ptr.hbm [resolvable:$true] %s13
      %s15 = sshll.u32 [#allocation2], 4
      %s16 = int_to_ptr.vmem [resolvable:$true] %s15
      %18 = dma.hbm_to_vmem [thread:$0]  %s14, 32, %s16, [#allocation3]
    $region5: #{tpu_custom_call.1} parent=1 // pred_fallthru
      _
    // Predicated region
    $region6: #{tpu_custom_call.1} parent=1 // pred_check
      _
    $region7: #{tpu_custom_call.1} parent=1 // pred_check_branch
      %20 = sbr.rel (0) target = $region9
    $region8: #{tpu_custom_call.1} parent=1 // pred_region
      %22 = dma.done [#allocation3], 32
    $region9: #{tpu_custom_call.1} parent=1 // pred_fallthru
      _
    %v23 = vld [vmem:[#allocation2] sm:$0x3]
    %v24 = vlaneseq
    %vm25 = vcmp.ge.s32.totalorder %v24, 0
    %vm26 = vcmp.lt.s32.totalorder %v24, 256
    %vm27 = vmand %vm25, %vm26
    %28 = vst.msk [vmem:[#allocation5] sm:$0x3] %vm27, %v23
    // Predicated region
    $region10: #{tpu_custom_call.1} parent=1 // pred_check
      _
    $region11: #{tpu_custom_call.1} parent=1 // pred_check_branch
      %30 = sbr.rel (0) target = $region13
    $region12: #{tpu_custom_call.1} parent=1 // pred_region
      %32 = vsyncadd [#allocation4], 0
      %s34 = sshll.u32 [#allocation5], 4
      %s35 = int_to_ptr.vmem [resolvable:$true] %s34
      %s36 = sshll.u32 %s1, 4
      %s37 = int_to_ptr.hbm [resolvable:$true] %s36
      %39 = dma.vmem_to_hbm [thread:$0]  %s35, 32, %s37, [#allocation4]
    $region13: #{tpu_custom_call.1} parent=1 // pred_fallthru
      _
    // Predicated region
    $region14: #{tpu_custom_call.1} parent=1 // pred_check
      _
    $region15: #{tpu_custom_call.1} parent=1 // pred_check_branch
      %41 = sbr.rel (0) target = $region17
    $region16: #{tpu_custom_call.1} parent=1 // pred_region
      %43 = dma.done [#allocation4], 32
    $region17: #{tpu_custom_call.1} parent=1 // pred_fallthru
      _
    %44 = vsyncpa [#allocation3], 1
    %45 = vsyncpa [#allocation4], 1

</llo_original>
